<compile_context>
chip_gen: v5e
topology: v5e:2x2
jax: 0.10.0
libtpu: 0.0.40
codegen_flags: <defaults>
</compile_context>

<pallas_src>
import jax
import jax.numpy as jnp
from jax.experimental import pallas as pl
from jax.experimental.pallas import tpu as pltpu

DNN_DIM = [128, 128, 128]


def _mlp_kernel(x_ref, w1_ref, b1_ref, w2_ref, b2_ref, w3_ref, b3_ref, o_ref):
    # Whole hot path (3 matmuls + bias + ReLU) runs in VMEM on one grid step
    # per batch tile.  Biases hoisted once (no re-emitted broadcasts per dot).
    b1 = b1_ref[...]
    b2 = b2_ref[...]
    b3 = b3_ref[...]

    # Layer 1: bf16 operands on the MXU, f32 accumulate; elementwise in f32.
    h = jnp.dot(x_ref[...], w1_ref[...], preferred_element_type=jnp.float32) + b1
    h = jnp.maximum(h, 0.0)

    # Layer 2.
    h = jnp.dot(h.astype(jnp.bfloat16), w2_ref[...],
                preferred_element_type=jnp.float32) + b2
    h = jnp.maximum(h, 0.0)

    # Layer 3.
    h = jnp.dot(h.astype(jnp.bfloat16), w3_ref[...],
                preferred_element_type=jnp.float32) + b3
    h = jnp.maximum(h, 0.0)

    o_ref[...] = h.astype(o_ref.dtype)


def deep_network_forward(x, params, *, batch_tile=256):
    """x: (B, stack_dim) float32. params: dict of w1,b1,w2,b2,w3,b3 (f32).

    Returns relu(fc3(relu(fc2(relu(fc1(x)))))) with shape (B, 128), f32.
    Matmuls run with bf16 operands / f32 accumulation on the MXU.
    """
    B, stack_dim = x.shape
    d1, d2, d3 = DNN_DIM
    out_dtype = x.dtype

    # Pad batch to a multiple of batch_tile (handles any B, incl. B < tile).
    n_tiles = pl.cdiv(B, batch_tile)
    B_pad = n_tiles * batch_tile
    if B_pad != B:
        x = jnp.pad(x, ((0, B_pad - B), (0, 0)))

    # bf16 operands for the MXU; biases stay f32 for the VPU adds.
    x_bf = x.astype(jnp.bfloat16)
    w1 = params["w1"].astype(jnp.bfloat16)
    w2 = params["w2"].astype(jnp.bfloat16)
    w3 = params["w3"].astype(jnp.bfloat16)
    b1 = params["b1"].astype(jnp.float32)
    b2 = params["b2"].astype(jnp.float32)
    b3 = params["b3"].astype(jnp.float32)

    grid = (n_tiles,)

    flops = 2 * B_pad * (stack_dim * d1 + d1 * d2 + d2 * d3)
    bytes_accessed = (
        B_pad * stack_dim * 2                       # x (bf16) read
        + B_pad * d3 * 4                            # output (f32) write
        + (stack_dim * d1 + d1 * d2 + d2 * d3) * 2  # weights (bf16)
        + (d1 + d2 + d3) * 4                        # biases (f32)
    )

    out = pl.pallas_call(
        _mlp_kernel,
        out_shape=jax.ShapeDtypeStruct((B_pad, d3), out_dtype),
        grid_spec=pltpu.PrefetchScalarGridSpec(
            num_scalar_prefetch=0,
            grid=grid,
            in_specs=[
                # x tiled along batch.
                pl.BlockSpec((batch_tile, stack_dim), lambda i: (i, 0)),
                # Weights / biases: full arrays, same block every step
                # (stay resident in VMEM, no re-DMA).
                pl.BlockSpec((stack_dim, d1), lambda i: (0, 0)),
                pl.BlockSpec((1, d1), lambda i: (0, 0)),
                pl.BlockSpec((d1, d2), lambda i: (0, 0)),
                pl.BlockSpec((1, d2), lambda i: (0, 0)),
                pl.BlockSpec((d2, d3), lambda i: (0, 0)),
                pl.BlockSpec((1, d3), lambda i: (0, 0)),
            ],
            out_specs=pl.BlockSpec((batch_tile, d3), lambda i: (i, 0)),
        ),
        compiler_params=pltpu.CompilerParams(
            dimension_semantics=("parallel",),
        ),
        cost_estimate=pl.CostEstimate(
            flops=flops, transcendentals=0, bytes_accessed=bytes_accessed
        ),
    )(x_bf, w1, b1, w2, b2, w3, b3)

    return out[:B] if B_pad != B else out


def init_params(key, stack_dim):
    """Deterministic init matching nn.Linear's default U(-1/sqrt(fan_in), +)."""
    d1, d2, d3 = DNN_DIM
    ks = jax.random.split(key, 6)

    def lin(kw, kb, fan_in, fan_out):
        bound = 1.0 / jnp.sqrt(fan_in)
        # Stored as (in, out) so the kernel computes x @ W.
        w = jax.random.uniform(kw, (fan_in, fan_out), jnp.float32, -bound, bound)
        b = jax.random.uniform(kb, (1, fan_out), jnp.float32, -bound, bound)
        return w, b

    w1, b1 = lin(ks[0], ks[1], stack_dim, d1)
    w2, b2 = lin(ks[2], ks[3], d1, d2)
    w3, b3 = lin(ks[4], ks[5], d2, d3)
    return {"w1": w1, "b1": b1, "w2": w2, "b2": b2, "w3": w3, "b3": b3}


def _reference(x, p):
    # Pure-f32 reference (PyTorch-equivalent math).
    h = jnp.maximum(x @ p["w1"] + p["b1"], 0.0)
    h = jnp.maximum(h @ p["w2"] + p["b2"], 0.0)
    h = jnp.maximum(h @ p["w3"] + p["b3"], 0.0)
    return h


if __name__ == "__main__":
    key = jax.random.PRNGKey(0)
    k_x, k_p = jax.random.split(key)

    batch = 8
    stack_dim = 32  # small stack dim consistent with Linear(stack_dim, 128)

    x = jax.random.normal(k_x, (batch, stack_dim), dtype=jnp.float32)
    params = init_params(k_p, stack_dim)

    out = deep_network_forward(x, params)
    out = jax.block_until_ready(out)

    ref = _reference(x, params)
    assert out.shape == (batch, DNN_DIM[2])
    # bf16 matmul operands (f32 accumulation) -> loosen tolerance vs f32 ref.
    assert jnp.allclose(out, ref, atol=5e-2, rtol=5e-2), "mismatch vs. reference"

    print("KERNEL_OK")
</pallas_src>

<mosaic_0001>
module attributes {stable_mosaic.version = 11 : i64} {
  func.func @_mlp_kernel(%arg0: i32, %arg1: memref<256x32xbf16, #tpu.memory_space<vmem>>, %arg2: memref<32x128xbf16, #tpu.memory_space<vmem>>, %arg3: memref<1x128xf32, #tpu.memory_space<vmem>>, %arg4: memref<128x128xbf16, #tpu.memory_space<vmem>>, %arg5: memref<1x128xf32, #tpu.memory_space<vmem>>, %arg6: memref<128x128xbf16, #tpu.memory_space<vmem>>, %arg7: memref<1x128xf32, #tpu.memory_space<vmem>>, %arg8: memref<256x128xf32, #tpu.memory_space<vmem>>) attributes {dimension_semantics = [#tpu.dimension_semantics<parallel>], iteration_bounds = array<i64: 1>, scalar_prefetch = 0 : i64, scratch_operands = 0 : i64, tpu.core_type = #tpu.core_type<tc>, window_params = [{transform_indices = @transform_0, window_bounds = array<i64: 256, 32>}, {pipeline_mode = #tpu.pipeline_mode<synchronous>, transform_indices = @transform_1, window_bounds = array<i64: 32, 128>}, {pipeline_mode = #tpu.pipeline_mode<synchronous>, transform_indices = @transform_2, window_bounds = array<i64: 1, 128>}, {pipeline_mode = #tpu.pipeline_mode<synchronous>, transform_indices = @transform_3, window_bounds = array<i64: 128, 128>}, {pipeline_mode = #tpu.pipeline_mode<synchronous>, transform_indices = @transform_4, window_bounds = array<i64: 1, 128>}, {pipeline_mode = #tpu.pipeline_mode<synchronous>, transform_indices = @transform_5, window_bounds = array<i64: 128, 128>}, {pipeline_mode = #tpu.pipeline_mode<synchronous>, transform_indices = @transform_6, window_bounds = array<i64: 1, 128>}, {transform_indices = @transform_7, window_bounds = array<i64: 256, 128>}]} {
    %c0 = arith.constant 0 : index
    %c0_0 = arith.constant 0 : index
    %0 = vector.load %arg3[%c0, %c0_0] : memref<1x128xf32, #tpu.memory_space<vmem>>, vector<1x128xf32>
    %c0_1 = arith.constant 0 : index
    %c0_2 = arith.constant 0 : index
    %1 = vector.load %arg5[%c0_1, %c0_2] : memref<1x128xf32, #tpu.memory_space<vmem>>, vector<1x128xf32>
    %c0_3 = arith.constant 0 : index
    %c0_4 = arith.constant 0 : index
    %2 = vector.load %arg7[%c0_3, %c0_4] : memref<1x128xf32, #tpu.memory_space<vmem>>, vector<1x128xf32>
    %c0_5 = arith.constant 0 : index
    %c0_6 = arith.constant 0 : index
    %3 = vector.load %arg1[%c0_5, %c0_6] : memref<256x32xbf16, #tpu.memory_space<vmem>>, vector<256x32xbf16>
    %c0_7 = arith.constant 0 : index
    %c0_8 = arith.constant 0 : index
    %4 = vector.load %arg2[%c0_7, %c0_8] : memref<32x128xbf16, #tpu.memory_space<vmem>>, vector<32x128xbf16>
    %cst = arith.constant dense<0.000000e+00> : vector<256x128xf32>
    %5 = tpu.matmul %3, %4, %cst {dimension_numbers = #tpu.dot_dimension_numbers<[1], [0], [0], [1], [0, 0, 1, 1], [], []>} : vector<256x32xbf16>, vector<32x128xbf16>, vector<256x128xf32> -> vector<256x128xf32>
    %6 = vector.broadcast %0 : vector<1x128xf32> to vector<256x128xf32>
    %7 = arith.addf %5, %6 : vector<256x128xf32>
    %cst_9 = arith.constant 0.000000e+00 : f32
    %8 = vector.broadcast %cst_9 : f32 to vector<256x128xf32>
    %9 = arith.maximumf %7, %8 : vector<256x128xf32>
    %10 = arith.truncf %9 : vector<256x128xf32> to vector<256x128xbf16>
    %c0_10 = arith.constant 0 : index
    %c0_11 = arith.constant 0 : index
    %11 = vector.load %arg4[%c0_10, %c0_11] : memref<128x128xbf16, #tpu.memory_space<vmem>>, vector<128x128xbf16>
    %cst_12 = arith.constant dense<0.000000e+00> : vector<256x128xf32>
    %12 = tpu.matmul %10, %11, %cst_12 {dimension_numbers = #tpu.dot_dimension_numbers<[1], [0], [0], [1], [0, 0, 1, 1], [], []>} : vector<256x128xbf16>, vector<128x128xbf16>, vector<256x128xf32> -> vector<256x128xf32>
    %13 = vector.broadcast %1 : vector<1x128xf32> to vector<256x128xf32>
    %14 = arith.addf %12, %13 : vector<256x128xf32>
    %cst_13 = arith.constant 0.000000e+00 : f32
    %15 = vector.broadcast %cst_13 : f32 to vector<256x128xf32>
    %16 = arith.maximumf %14, %15 : vector<256x128xf32>
    %17 = arith.truncf %16 : vector<256x128xf32> to vector<256x128xbf16>
    %c0_14 = arith.constant 0 : index
    %c0_15 = arith.constant 0 : index
    %18 = vector.load %arg6[%c0_14, %c0_15] : memref<128x128xbf16, #tpu.memory_space<vmem>>, vector<128x128xbf16>
    %cst_16 = arith.constant dense<0.000000e+00> : vector<256x128xf32>
    %19 = tpu.matmul %17, %18, %cst_16 {dimension_numbers = #tpu.dot_dimension_numbers<[1], [0], [0], [1], [0, 0, 1, 1], [], []>} : vector<256x128xbf16>, vector<128x128xbf16>, vector<256x128xf32> -> vector<256x128xf32>
    %20 = vector.broadcast %2 : vector<1x128xf32> to vector<256x128xf32>
    %21 = arith.addf %19, %20 : vector<256x128xf32>
    %cst_17 = arith.constant 0.000000e+00 : f32
    %22 = vector.broadcast %cst_17 : f32 to vector<256x128xf32>
    %23 = arith.maximumf %21, %22 : vector<256x128xf32>
    %c0_18 = arith.constant 0 : index
    %c0_19 = arith.constant 0 : index
    %24 = vector.load %arg8[%c0_18, %c0_19] : memref<256x128xf32, #tpu.memory_space<vmem>>, vector<256x128xf32>
    tpu.vector_store %arg8[%c0_18, %c0_19], %23 {strides = array<i32>} : memref<256x128xf32, #tpu.memory_space<vmem>>, vector<256x128xf32>,
    return
  }
  func.func @transform_0(%arg0: i32) -> (i32, i32) {
    %c0_i32 = arith.constant 0 : i32
    %c0_i32_0 = arith.constant 0 : i32
    return %arg0, %c0_i32 : i32, i32
  }
  func.func @transform_1(%arg0: i32) -> (i32, i32) {
    %c0_i32 = arith.constant 0 : i32
    %c0_i32_0 = arith.constant 0 : i32
    %c0_i32_1 = arith.constant 0 : i32
    return %c0_i32, %c0_i32_0 : i32, i32
  }
  func.func @transform_2(%arg0: i32) -> (i32, i32) {
    %c0_i32 = arith.constant 0 : i32
    %c0_i32_0 = arith.constant 0 : i32
    %c0_i32_1 = arith.constant 0 : i32
    return %c0_i32, %c0_i32_0 : i32, i32
  }
  func.func @transform_3(%arg0: i32) -> (i32, i32) {
    %c0_i32 = arith.constant 0 : i32
    %c0_i32_0 = arith.constant 0 : i32
    %c0_i32_1 = arith.constant 0 : i32
    return %c0_i32, %c0_i32_0 : i32, i32
  }
  func.func @transform_4(%arg0: i32) -> (i32, i32) {
    %c0_i32 = arith.constant 0 : i32
    %c0_i32_0 = arith.constant 0 : i32
    %c0_i32_1 = arith.constant 0 : i32
    return %c0_i32, %c0_i32_0 : i32, i32
  }
  func.func @transform_5(%arg0: i32) -> (i32, i32) {
    %c0_i32 = arith.constant 0 : i32
    %c0_i32_0 = arith.constant 0 : i32
    %c0_i32_1 = arith.constant 0 : i32
    return %c0_i32, %c0_i32_0 : i32, i32
  }
  func.func @transform_6(%arg0: i32) -> (i32, i32) {
    %c0_i32 = arith.constant 0 : i32
    %c0_i32_0 = arith.constant 0 : i32
    %c0_i32_1 = arith.constant 0 : i32
    return %c0_i32, %c0_i32_0 : i32, i32
  }
  func.func @transform_7(%arg0: i32) -> (i32, i32) {
    %c0_i32 = arith.constant 0 : i32
    %c0_i32_0 = arith.constant 0 : i32
    return %arg0, %c0_i32 : i32, i32
  }
}

</mosaic_0001>

<llo_original>
// kernel: tpu_custom_call.1
$region0: #{tpu_custom_call.1}
  #allocation0 [shape = 'u32[]', space=smem, size = 0x4, offset = 0x4, fixed_abs, tag = 'smem constant byte address 0x4 - core index']
  #allocation1 [shape = 'u32[72,128]{1,0:T(1,128)}', space=vmem, size = 0x9000, scoped, tag = 'internal scratch']
  %s0 = inlined_call_operand.vmem [shape: bf16[256,32], index: 0, kind: input, shape index: {}]
  %s1 = inlined_call_operand.vmem [shape: bf16[32,128], index: 1, kind: input, shape index: {}]
  %s2 = inlined_call_operand.vmem [shape: f32[1,128], index: 2, kind: input, shape index: {}]
  %s3 = inlined_call_operand.vmem [shape: bf16[128,128], index: 3, kind: input, shape index: {}]
  %s4 = inlined_call_operand.vmem [shape: f32[1,128], index: 4, kind: input, shape index: {}]
  %s5 = inlined_call_operand.vmem [shape: bf16[128,128], index: 5, kind: input, shape index: {}]
  %s6 = inlined_call_operand.vmem [shape: f32[1,128], index: 6, kind: input, shape index: {}]
  %s7 = inlined_call_operand.hbm [shape: f32[256,128], index: 7, kind: output, shape index: {}]
  %s8 = sld [smem:[#allocation0]]
  $region38: #{tpu_custom_call.1} parent=0
    _
  %s10 = ssub.s32 1, %s8
  %s11 = scalar_select 0, %s10, %s8
  $region1: #{tpu_custom_call.1} parent=0
    #allocation2 [shape = 'u8[131072]{0}', space=vmem, size = 0x20000, scoped, tag = 'output window, operand 0, single buffered']
    #allocation3 [shape = 's32[1]{0}', space=sflag, size = 0x4, scoped, tag = 'scoped memory for tpu_custom_call.1']
    %12 = vsyncpa [#allocation3], 0
    // Predicated region
    $region2: #{tpu_custom_call.1} parent=1 // pred_check
      _
    $region3: #{tpu_custom_call.1} parent=1 // pred_check_branch
      %14 = sbr.rel (0) target = $region5
    $region4: #{tpu_custom_call.1} parent=1 // pred_region
      _
    $region5: #{tpu_custom_call.1} parent=1 // pred_fallthru
      _
    // Predicated region
    $region6: #{tpu_custom_call.1} parent=1 // pred_check
      _
    $region7: #{tpu_custom_call.1} parent=1 // pred_check_branch
      %16 = sbr.rel (0) target = $region9
    $region8: #{tpu_custom_call.1} parent=1 // pred_region
      _
    $region9: #{tpu_custom_call.1} parent=1 // pred_fallthru
      _
    // Predicated region
    $region10: #{tpu_custom_call.1} parent=1 // pred_check
      _
    $region11: #{tpu_custom_call.1} parent=1 // pred_check_branch
      %18 = sbr.rel (0) target = $region13
    $region12: #{tpu_custom_call.1} parent=1 // pred_region
      _
    $region13: #{tpu_custom_call.1} parent=1 // pred_fallthru
      _
    // Predicated region
    $region14: #{tpu_custom_call.1} parent=1 // pred_check
      _
    $region15: #{tpu_custom_call.1} parent=1 // pred_check_branch
      %20 = sbr.rel (0) target = $region17
    $region16: #{tpu_custom_call.1} parent=1 // pred_region
      _
    $region17: #{tpu_custom_call.1} parent=1 // pred_fallthru
      _
    // Predicated region
    $region18: #{tpu_custom_call.1} parent=1 // pred_check
      _
    $region19: #{tpu_custom_call.1} parent=1 // pred_check_branch
      %22 = sbr.rel (0) target = $region21
    $region20: #{tpu_custom_call.1} parent=1 // pred_region
      _
    $region21: #{tpu_custom_call.1} parent=1 // pred_fallthru
      _
    // Predicated region
    $region22: #{tpu_custom_call.1} parent=1 // pred_check
      _
    $region23: #{tpu_custom_call.1} parent=1 // pred_check_branch
      %24 = sbr.rel (0) target = $region25
    $region24: #{tpu_custom_call.1} parent=1 // pred_region
      _
    $region25: #{tpu_custom_call.1} parent=1 // pred_fallthru
      _
    // Predicated region
    $region26: #{tpu_custom_call.1} parent=1 // pred_check
      _
    $region27: #{tpu_custom_call.1} parent=1 // pred_check_branch
      %26 = sbr.rel (0) target = $region29
    $region28: #{tpu_custom_call.1} parent=1 // pred_region
      _
    $region29: #{tpu_custom_call.1} parent=1 // pred_fallthru
      _
    %v28 = vld [vmem:[%s2] sm:$0x1]
    %v29 = vld [vmem:[%s4] sm:$0x1]
    %v30 = vld [vmem:[%s6] sm:$0x1]
    %v31 = vld [vmem:[%s0] sm:$0xf]
    %v32 = vld [vmem:[%s0 + $0x4] sm:$0xf]
    %v33 = vld [vmem:[%s0 + $0x8] sm:$0xf]
    %v34 = vld [vmem:[%s0 + $0xc] sm:$0xf]
    %v35 = vld [vmem:[%s0 + $0x10] sm:$0xf]
    %v36 = vld [vmem:[%s0 + $0x14] sm:$0xf]
    %v37 = vld [vmem:[%s0 + $0x18] sm:$0xf]
    %v38 = vld [vmem:[%s0 + $0x1c] sm:$0xf]
    %v39 = vld [vmem:[%s0 + $0x20] sm:$0xf]
    %v40 = vld [vmem:[%s0 + $0x24] sm:$0xf]
    %v41 = vld [vmem:[%s0 + $0x28] sm:$0xf]
    %v42 = vld [vmem:[%s0 + $0x2c] sm:$0xf]
    %v43 = vld [vmem:[%s0 + $0x30] sm:$0xf]
    %v44 = vld [vmem:[%s0 + $0x34] sm:$0xf]
    %v45 = vld [vmem:[%s0 + $0x38] sm:$0xf]
    %v46 = vld [vmem:[%s0 + $0x3c] sm:$0xf]
    %v47 = vld [vmem:[%s0 + $0x40] sm:$0xf]
    %v48 = vld [vmem:[%s0 + $0x44] sm:$0xf]
    %v49 = vld [vmem:[%s0 + $0x48] sm:$0xf]
    %v50 = vld [vmem:[%s0 + $0x4c] sm:$0xf]
    %v51 = vld [vmem:[%s0 + $0x50] sm:$0xf]
    %v52 = vld [vmem:[%s0 + $0x54] sm:$0xf]
    %v53 = vld [vmem:[%s0 + $0x58] sm:$0xf]
    %v54 = vld [vmem:[%s0 + $0x5c] sm:$0xf]
    %v55 = vld [vmem:[%s0 + $0x60] sm:$0xf]
    %v56 = vld [vmem:[%s0 + $0x64] sm:$0xf]
    %v57 = vld [vmem:[%s0 + $0x68] sm:$0xf]
    %v58 = vld [vmem:[%s0 + $0x6c] sm:$0xf]
    %v59 = vld [vmem:[%s0 + $0x70] sm:$0xf]
    %v60 = vld [vmem:[%s0 + $0x74] sm:$0xf]
    %v61 = vld [vmem:[%s0 + $0x78] sm:$0xf]
    %v62 = vld [vmem:[%s0 + $0x7c] sm:$0xf]
    %v63 = vld [vmem:[%s1] sm:$0xf]
    %v64 = vld [vmem:[%s1 + $0x4] sm:$0xf]
    %v65 = vld [vmem:[%s1 + $0x8] sm:$0xf]
    %v66 = vld [vmem:[%s1 + $0xc] sm:$0xf]
    %v68 = vperm.slane %v28, 0
    %v102 = vunpack.c.l.b16 %v31
    %v103 = vunpack.c.l.b16 %v32
    %v104 = vunpack.c.l.b16 %v33
    %v105 = vunpack.c.l.b16 %v34
    %v106 = vunpack.c.l.b16 %v35
    %v107 = vunpack.c.l.b16 %v36
    %v108 = vunpack.c.l.b16 %v37
    %v109 = vunpack.c.l.b16 %v38
    %v110 = vunpack.c.l.b16 %v39
    %v111 = vunpack.c.l.b16 %v40
    %v112 = vunpack.c.l.b16 %v41
    %v113 = vunpack.c.l.b16 %v42
    %v114 = vunpack.c.l.b16 %v43
    %v115 = vunpack.c.l.b16 %v44
    %v116 = vunpack.c.l.b16 %v45
    %v117 = vunpack.c.l.b16 %v46
    %v118 = vunpack.c.l.b16 %v47
    %v119 = vunpack.c.l.b16 %v48
    %v120 = vunpack.c.l.b16 %v49
    %v121 = vunpack.c.l.b16 %v50
    %v122 = vunpack.c.l.b16 %v51
    %v123 = vunpack.c.l.b16 %v52
    %v124 = vunpack.c.l.b16 %v53
    %v125 = vunpack.c.l.b16 %v54
    %v126 = vunpack.c.l.b16 %v55
    %v127 = vunpack.c.l.b16 %v56
    %v128 = vunpack.c.l.b16 %v57
    %v129 = vunpack.c.l.b16 %v58
    %v130 = vunpack.c.l.b16 %v59
    %v131 = vunpack.c.l.b16 %v60
    %v132 = vunpack.c.l.b16 %v61
    %v133 = vunpack.c.l.b16 %v62
    %v134 = vpack.c.b16 %v103, %v102
    %v135 = vpack.c.b16 %v105, %v104
    %v136 = vpack.c.b16 %v107, %v106
    %v137 = vpack.c.b16 %v109, %v108
    %v138 = vpack.c.b16 %v111, %v110
    %v139 = vpack.c.b16 %v113, %v112
    %v140 = vpack.c.b16 %v115, %v114
    %v141 = vpack.c.b16 %v117, %v116
    %v142 = vpack.c.b16 %v119, %v118
    %v143 = vpack.c.b16 %v121, %v120
    %v144 = vpack.c.b16 %v123, %v122
    %v145 = vpack.c.b16 %v125, %v124
    %v146 = vpack.c.b16 %v127, %v126
    %v147 = vpack.c.b16 %v129, %v128
    %v148 = vpack.c.b16 %v131, %v130
    %v149 = vpack.c.b16 %v133, %v132
    %v154 = vunpack.c.l.b16 %v63
    %v155 = vunpack.c.l.b16 %v64
    %v156 = vunpack.c.l.b16 %v65
    %v157 = vunpack.c.l.b16 %v66
    %v158 = vpack.c.b16 %v155, %v154
    %v159 = vpack.c.b16 %v157, %v156
    %vm162 = vcmask 261120
    %v164 = vsel %vm162, %v134, 0
    %v167 = vsel %vm162, %v135, 0
    %v170 = vsel %vm162, %v136, 0
    %v173 = vsel %vm162, %v137, 0
    %v176 = vsel %vm162, %v138, 0
    %v179 = vsel %vm162, %v139, 0
    %v182 = vsel %vm162, %v140, 0
    %v185 = vsel %vm162, %v141, 0
    %v188 = vsel %vm162, %v142, 0
    %v191 = vsel %vm162, %v143, 0
    %v194 = vsel %vm162, %v144, 0
    %v197 = vsel %vm162, %v145, 0
    %v200 = vsel %vm162, %v146, 0
    %v203 = vsel %vm162, %v147, 0
    %v206 = vsel %vm162, %v148, 0
    %v209 = vsel %vm162, %v149, 0
    %211 = vmatpush.bf16.msra.mxu0 0
    %212 = vmatpush.bf16.msra.mxu0 0
    %213 = vmatpush.bf16.msra.mxu0 0
    %214 = vmatpush.bf16.msra.mxu0 0
    %215 = vmatpush.bf16.msra.mxu0 0
    %216 = vmatpush.bf16.msra.mxu0 0
    %217 = vmatpush.bf16.msra.mxu0 %v159
    %218 = vmatpush.bf16.msra.mxu0 %v158
    %219 = vmatmul.bf16.gmra.mxu0 %v164
    %v220 = vpop.f32.mrf.mxu0
    %v221 = vadd.f32 %v68, %v220
    %v222 = vpop.f32.mrf.mxu0
    %v223 = vadd.f32 %v68, %v222
    %224 = vmatmul.bf16.gmra.mxu0 %v167
    %v225 = vpop.f32.mrf.mxu0
    %v226 = vadd.f32 %v68, %v225
    %v227 = vpop.f32.mrf.mxu0
    %v228 = vadd.f32 %v68, %v227
    %229 = vmatmul.bf16.gmra.mxu0 %v170
    %v230 = vpop.f32.mrf.mxu0
    %v231 = vadd.f32 %v68, %v230
    %v232 = vpop.f32.mrf.mxu0
    %v233 = vadd.f32 %v68, %v232
    %234 = vmatmul.bf16.gmra.mxu0 %v173
    %v235 = vpop.f32.mrf.mxu0
    %v236 = vadd.f32 %v68, %v235
    %v237 = vpop.f32.mrf.mxu0
    %v238 = vadd.f32 %v68, %v237
    %239 = vmatmul.bf16.gmra.mxu0 %v176
    %v240 = vpop.f32.mrf.mxu0
    %v241 = vadd.f32 %v68, %v240
    %v242 = vpop.f32.mrf.mxu0
    %v243 = vadd.f32 %v68, %v242
    %244 = vmatmul.bf16.gmra.mxu0 %v179
    %v245 = vpop.f32.mrf.mxu0
    %v246 = vadd.f32 %v68, %v245
    %v247 = vpop.f32.mrf.mxu0
    %v248 = vadd.f32 %v68, %v247
    %249 = vmatmul.bf16.gmra.mxu0 %v182
    %v250 = vpop.f32.mrf.mxu0
    %v251 = vadd.f32 %v68, %v250
    %v252 = vpop.f32.mrf.mxu0
    %v253 = vadd.f32 %v68, %v252
    %254 = vmatmul.bf16.gmra.mxu0 %v185
    %v255 = vpop.f32.mrf.mxu0
    %v256 = vadd.f32 %v68, %v255
    %v257 = vpop.f32.mrf.mxu0
    %v258 = vadd.f32 %v68, %v257
    %259 = vmatmul.bf16.gmra.mxu0 %v188
    %v260 = vpop.f32.mrf.mxu0
    %v261 = vadd.f32 %v68, %v260
    %v262 = vpop.f32.mrf.mxu0
    %v263 = vadd.f32 %v68, %v262
    %264 = vmatmul.bf16.gmra.mxu0 %v191
    %v265 = vpop.f32.mrf.mxu0
    %v266 = vadd.f32 %v68, %v265
    %v267 = vpop.f32.mrf.mxu0
    %v268 = vadd.f32 %v68, %v267
    %269 = vmatmul.bf16.gmra.mxu0 %v194
    %v270 = vpop.f32.mrf.mxu0
    %v271 = vadd.f32 %v68, %v270
    %v272 = vpop.f32.mrf.mxu0
    %v273 = vadd.f32 %v68, %v272
    %274 = vmatmul.bf16.gmra.mxu0 %v197
    %v275 = vpop.f32.mrf.mxu0
    %v276 = vadd.f32 %v68, %v275
    %v277 = vpop.f32.mrf.mxu0
    %v278 = vadd.f32 %v68, %v277
    %279 = vmatmul.bf16.gmra.mxu0 %v200
    %v280 = vpop.f32.mrf.mxu0
    %v281 = vadd.f32 %v68, %v280
    %v282 = vpop.f32.mrf.mxu0
    %v283 = vadd.f32 %v68, %v282
    %284 = vmatmul.bf16.gmra.mxu0 %v203
    %v285 = vpop.f32.mrf.mxu0
    %v286 = vadd.f32 %v68, %v285
    %v287 = vpop.f32.mrf.mxu0
    %v288 = vadd.f32 %v68, %v287
    %289 = vmatmul.bf16.gmra.mxu0 %v206
    %v290 = vpop.f32.mrf.mxu0
    %v291 = vadd.f32 %v68, %v290
    %v292 = vpop.f32.mrf.mxu0
    %v293 = vadd.f32 %v68, %v292
    %294 = vmatmul.bf16.gmra.mxu0 %v209
    %v295 = vpop.f32.mrf.mxu0
    %v296 = vadd.f32 %v68, %v295
    %v297 = vpop.f32.mrf.mxu0
    %v298 = vadd.f32 %v68, %v297
    %299 = vdwg.mxu0
    %v300 = vmax.f32 %v221, 0.0
    %v301 = vmax.f32 %v223, 0.0
    %v302 = vmax.f32 %v226, 0.0
    %v303 = vmax.f32 %v228, 0.0
    %v304 = vmax.f32 %v231, 0.0
    %v305 = vmax.f32 %v233, 0.0
    %v306 = vmax.f32 %v236, 0.0
    %v307 = vmax.f32 %v238, 0.0
    %v308 = vmax.f32 %v241, 0.0
    %v309 = vmax.f32 %v243, 0.0
    %v310 = vmax.f32 %v246, 0.0
    %v311 = vmax.f32 %v248, 0.0
    %v312 = vmax.f32 %v251, 0.0
    %v313 = vmax.f32 %v253, 0.0
    %v314 = vmax.f32 %v256, 0.0
    %v315 = vmax.f32 %v258, 0.0
    %v316 = vmax.f32 %v261, 0.0
    %v317 = vmax.f32 %v263, 0.0
    %v318 = vmax.f32 %v266, 0.0
    %v319 = vmax.f32 %v268, 0.0
    %v320 = vmax.f32 %v271, 0.0
    %v321 = vmax.f32 %v273, 0.0
    %v322 = vmax.f32 %v276, 0.0
    %v323 = vmax.f32 %v278, 0.0
    %v324 = vmax.f32 %v281, 0.0
    %v325 = vmax.f32 %v283, 0.0
    %v326 = vmax.f32 %v286, 0.0
    %v327 = vmax.f32 %v288, 0.0
    %v328 = vmax.f32 %v291, 0.0
    %v329 = vmax.f32 %v293, 0.0
    %v330 = vmax.f32 %v296, 0.0
    %v331 = vmax.f32 %v298, 0.0
    %v332 = vpack.c.bf16 %v301, %v300
    %v333 = vpack.c.bf16 %v303, %v302
    %v334 = vpack.c.bf16 %v305, %v304
    %v335 = vpack.c.bf16 %v307, %v306
    %v336 = vpack.c.bf16 %v309, %v308
    %v337 = vpack.c.bf16 %v311, %v310
    %v338 = vpack.c.bf16 %v313, %v312
    %v339 = vpack.c.bf16 %v315, %v314
    %v340 = vpack.c.bf16 %v317, %v316
    %v341 = vpack.c.bf16 %v319, %v318
    %v342 = vpack.c.bf16 %v321, %v320
    %v343 = vpack.c.bf16 %v323, %v322
    %v344 = vpack.c.bf16 %v325, %v324
    %v345 = vpack.c.bf16 %v327, %v326
    %v346 = vpack.c.bf16 %v329, %v328
    %v347 = vpack.c.bf16 %v331, %v330
    %v348 = vld [vmem:[%s3] sm:$0xf]
    %v349 = vld [vmem:[%s3 + $0x4] sm:$0xf]
    %v350 = vld [vmem:[%s3 + $0x8] sm:$0xf]
    %v351 = vld [vmem:[%s3 + $0xc] sm:$0xf]
    %v352 = vld [vmem:[%s3 + $0x10] sm:$0xf]
    %v353 = vld [vmem:[%s3 + $0x14] sm:$0xf]
    %v354 = vld [vmem:[%s3 + $0x18] sm:$0xf]
    %v355 = vld [vmem:[%s3 + $0x1c] sm:$0xf]
    %v356 = vld [vmem:[%s3 + $0x20] sm:$0xf]
    %v357 = vld [vmem:[%s3 + $0x24] sm:$0xf]
    %v358 = vld [vmem:[%s3 + $0x28] sm:$0xf]
    %v359 = vld [vmem:[%s3 + $0x2c] sm:$0xf]
    %v360 = vld [vmem:[%s3 + $0x30] sm:$0xf]
    %v361 = vld [vmem:[%s3 + $0x34] sm:$0xf]
    %v362 = vld [vmem:[%s3 + $0x38] sm:$0xf]
    %v363 = vld [vmem:[%s3 + $0x3c] sm:$0xf]
    %v365 = vperm.slane %v29, 0
    %v383 = vunpack.c.l.b16 %v348
    %v384 = vunpack.c.l.b16 %v349
    %v385 = vunpack.c.l.b16 %v350
    %v386 = vunpack.c.l.b16 %v351
    %v387 = vunpack.c.l.b16 %v352
    %v388 = vunpack.c.l.b16 %v353
    %v389 = vunpack.c.l.b16 %v354
    %v390 = vunpack.c.l.b16 %v355
    %v391 = vunpack.c.l.b16 %v356
    %v392 = vunpack.c.l.b16 %v357
    %v393 = vunpack.c.l.b16 %v358
    %v394 = vunpack.c.l.b16 %v359
    %v395 = vunpack.c.l.b16 %v360
    %v396 = vunpack.c.l.b16 %v361
    %v397 = vunpack.c.l.b16 %v362
    %v398 = vunpack.c.l.b16 %v363
    %v399 = vpack.c.b16 %v384, %v383
    %v400 = vpack.c.b16 %v386, %v385
    %v401 = vpack.c.b16 %v388, %v387
    %v402 = vpack.c.b16 %v390, %v389
    %v403 = vpack.c.b16 %v392, %v391
    %v404 = vpack.c.b16 %v394, %v393
    %v405 = vpack.c.b16 %v396, %v395
    %v406 = vpack.c.b16 %v398, %v397
    %415 = vmatpush.bf16.msra.mxu0 %v406
    %416 = vmatpush.bf16.msra.mxu0 %v405
    %417 = vmatpush.bf16.msra.mxu0 %v404
    %418 = vmatpush.bf16.msra.mxu0 %v403
    %419 = vmatpush.bf16.msra.mxu0 %v402
    %420 = vmatpush.bf16.msra.mxu0 %v401
    %421 = vmatpush.bf16.msra.mxu0 %v400
    %422 = vmatpush.bf16.msra.mxu0 %v399
    %423 = vmatmul.bf16.gmra.mxu0 %v332
    %v424 = vpop.f32.mrf.mxu0
    %v425 = vadd.f32 %v365, %v424
    %v426 = vpop.f32.mrf.mxu0
    %v427 = vadd.f32 %v365, %v426
    %428 = vmatmul.bf16.gmra.mxu0 %v333
    %v429 = vpop.f32.mrf.mxu0
    %v430 = vadd.f32 %v365, %v429
    %v431 = vpop.f32.mrf.mxu0
    %v432 = vadd.f32 %v365, %v431
    %433 = vmatmul.bf16.gmra.mxu0 %v334
    %v434 = vpop.f32.mrf.mxu0
    %v435 = vadd.f32 %v365, %v434
    %v436 = vpop.f32.mrf.mxu0
    %v437 = vadd.f32 %v365, %v436
    %438 = vmatmul.bf16.gmra.mxu0 %v335
    %v439 = vpop.f32.mrf.mxu0
    %v440 = vadd.f32 %v365, %v439
    %v441 = vpop.f32.mrf.mxu0
    %v442 = vadd.f32 %v365, %v441
    %443 = vmatmul.bf16.gmra.mxu0 %v336
    %v444 = vpop.f32.mrf.mxu0
    %v445 = vadd.f32 %v365, %v444
    %v446 = vpop.f32.mrf.mxu0
    %v447 = vadd.f32 %v365, %v446
    %448 = vmatmul.bf16.gmra.mxu0 %v337
    %v449 = vpop.f32.mrf.mxu0
    %v450 = vadd.f32 %v365, %v449
    %v451 = vpop.f32.mrf.mxu0
    %v452 = vadd.f32 %v365, %v451
    %453 = vmatmul.bf16.gmra.mxu0 %v338
    %v454 = vpop.f32.mrf.mxu0
    %v455 = vadd.f32 %v365, %v454
    %v456 = vpop.f32.mrf.mxu0
    %v457 = vadd.f32 %v365, %v456
    %458 = vmatmul.bf16.gmra.mxu0 %v339
    %v459 = vpop.f32.mrf.mxu0
    %v460 = vadd.f32 %v365, %v459
    %v461 = vpop.f32.mrf.mxu0
    %v462 = vadd.f32 %v365, %v461
    %463 = vmatmul.bf16.gmra.mxu0 %v340
    %v464 = vpop.f32.mrf.mxu0
    %v465 = vadd.f32 %v365, %v464
    %v466 = vpop.f32.mrf.mxu0
    %v467 = vadd.f32 %v365, %v466
    %468 = vmatmul.bf16.gmra.mxu0 %v341
    %v469 = vpop.f32.mrf.mxu0
    %v470 = vadd.f32 %v365, %v469
    %v471 = vpop.f32.mrf.mxu0
    %v472 = vadd.f32 %v365, %v471
    %473 = vmatmul.bf16.gmra.mxu0 %v342
    %v474 = vpop.f32.mrf.mxu0
    %v475 = vadd.f32 %v365, %v474
    %v476 = vpop.f32.mrf.mxu0
    %v477 = vadd.f32 %v365, %v476
    %478 = vmatmul.bf16.gmra.mxu0 %v343
    %v479 = vpop.f32.mrf.mxu0
    %v480 = vadd.f32 %v365, %v479
    %v481 = vpop.f32.mrf.mxu0
    %v482 = vadd.f32 %v365, %v481
    %483 = vmatmul.bf16.gmra.mxu0 %v344
    %v484 = vpop.f32.mrf.mxu0
    %v485 = vadd.f32 %v365, %v484
    %v486 = vpop.f32.mrf.mxu0
    %v487 = vadd.f32 %v365, %v486
    %488 = vmatmul.bf16.gmra.mxu0 %v345
    %v489 = vpop.f32.mrf.mxu0
    %v490 = vadd.f32 %v365, %v489
    %v491 = vpop.f32.mrf.mxu0
    %v492 = vadd.f32 %v365, %v491
    %493 = vmatmul.bf16.gmra.mxu0 %v346
    %v494 = vpop.f32.mrf.mxu0
    %v495 = vadd.f32 %v365, %v494
    %v496 = vpop.f32.mrf.mxu0
    %v497 = vadd.f32 %v365, %v496
    %498 = vmatmul.bf16.gmra.mxu0 %v347
    %v499 = vpop.f32.mrf.mxu0
    %v500 = vadd.f32 %v365, %v499
    %v501 = vpop.f32.mrf.mxu0
    %v502 = vadd.f32 %v365, %v501
    %503 = vdwg.mxu0
    %v504 = vmax.f32 %v425, 0.0
    %v505 = vmax.f32 %v427, 0.0
    %v506 = vmax.f32 %v430, 0.0
    %v507 = vmax.f32 %v432, 0.0
    %v508 = vmax.f32 %v435, 0.0
    %v509 = vmax.f32 %v437, 0.0
    %v510 = vmax.f32 %v440, 0.0
    %v511 = vmax.f32 %v442, 0.0
    %v512 = vmax.f32 %v445, 0.0
    %v513 = vmax.f32 %v447, 0.0
    %v514 = vmax.f32 %v450, 0.0
    %v515 = vmax.f32 %v452, 0.0
    %v516 = vmax.f32 %v455, 0.0
    %v517 = vmax.f32 %v457, 0.0
    %v518 = vmax.f32 %v460, 0.0
    %v519 = vmax.f32 %v462, 0.0
    %v520 = vmax.f32 %v465, 0.0
    %v521 = vmax.f32 %v467, 0.0
    %v522 = vmax.f32 %v470, 0.0
    %v523 = vmax.f32 %v472, 0.0
    %v524 = vmax.f32 %v475, 0.0
    %v525 = vmax.f32 %v477, 0.0
    %v526 = vmax.f32 %v480, 0.0
    %v527 = vmax.f32 %v482, 0.0
    %v528 = vmax.f32 %v485, 0.0
    %v529 = vmax.f32 %v487, 0.0
    %v530 = vmax.f32 %v490, 0.0
    %v531 = vmax.f32 %v492, 0.0
    %v532 = vmax.f32 %v495, 0.0
    %v533 = vmax.f32 %v497, 0.0
    %v534 = vmax.f32 %v500, 0.0
    %v535 = vmax.f32 %v502, 0.0
    %v536 = vpack.c.bf16 %v505, %v504
    %v537 = vpack.c.bf16 %v507, %v506
    %v538 = vpack.c.bf16 %v509, %v508
    %v539 = vpack.c.bf16 %v511, %v510
    %v540 = vpack.c.bf16 %v513, %v512
    %v541 = vpack.c.bf16 %v515, %v514
    %v542 = vpack.c.bf16 %v517, %v516
    %v543 = vpack.c.bf16 %v519, %v518
    %v544 = vpack.c.bf16 %v521, %v520
    %v545 = vpack.c.bf16 %v523, %v522
    %v546 = vpack.c.bf16 %v525, %v524
    %v547 = vpack.c.bf16 %v527, %v526
    %v548 = vpack.c.bf16 %v529, %v528
    %v549 = vpack.c.bf16 %v531, %v530
    %v550 = vpack.c.bf16 %v533, %v532
    %v551 = vpack.c.bf16 %v535, %v534
    %v552 = vld [vmem:[%s5] sm:$0xf]
    %v553 = vld [vmem:[%s5 + $0x4] sm:$0xf]
    %v554 = vld [vmem:[%s5 + $0x8] sm:$0xf]
    %v555 = vld [vmem:[%s5 + $0xc] sm:$0xf]
    %v556 = vld [vmem:[%s5 + $0x10] sm:$0xf]
    %v557 = vld [vmem:[%s5 + $0x14] sm:$0xf]
    %v558 = vld [vmem:[%s5 + $0x18] sm:$0xf]
    %v559 = vld [vmem:[%s5 + $0x1c] sm:$0xf]
    %v560 = vld [vmem:[%s5 + $0x20] sm:$0xf]
    %v561 = vld [vmem:[%s5 + $0x24] sm:$0xf]
    %v562 = vld [vmem:[%s5 + $0x28] sm:$0xf]
    %v563 = vld [vmem:[%s5 + $0x2c] sm:$0xf]
    %v564 = vld [vmem:[%s5 + $0x30] sm:$0xf]
    %v565 = vld [vmem:[%s5 + $0x34] sm:$0xf]
    %v566 = vld [vmem:[%s5 + $0x38] sm:$0xf]
    %v567 = vld [vmem:[%s5 + $0x3c] sm:$0xf]
    %v569 = vperm.slane %v30, 0
    %v587 = vunpack.c.l.b16 %v552
    %v588 = vunpack.c.l.b16 %v553
    %v589 = vunpack.c.l.b16 %v554
    %v590 = vunpack.c.l.b16 %v555
    %v591 = vunpack.c.l.b16 %v556
    %v592 = vunpack.c.l.b16 %v557
    %v593 = vunpack.c.l.b16 %v558
    %v594 = vunpack.c.l.b16 %v559
    %v595 = vunpack.c.l.b16 %v560
    %v596 = vunpack.c.l.b16 %v561
    %v597 = vunpack.c.l.b16 %v562
    %v598 = vunpack.c.l.b16 %v563
    %v599 = vunpack.c.l.b16 %v564
    %v600 = vunpack.c.l.b16 %v565
    %v601 = vunpack.c.l.b16 %v566
    %v602 = vunpack.c.l.b16 %v567
    %v603 = vpack.c.b16 %v588, %v587
    %v604 = vpack.c.b16 %v590, %v589
    %v605 = vpack.c.b16 %v592, %v591
    %v606 = vpack.c.b16 %v594, %v593
    %v607 = vpack.c.b16 %v596, %v595
    %v608 = vpack.c.b16 %v598, %v597
    %v609 = vpack.c.b16 %v600, %v599
    %v610 = vpack.c.b16 %v602, %v601
    %619 = vmatpush.bf16.msra.mxu0 %v610
    %620 = vmatpush.bf16.msra.mxu0 %v609
    %621 = vmatpush.bf16.msra.mxu0 %v608
    %622 = vmatpush.bf16.msra.mxu0 %v607
    %623 = vmatpush.bf16.msra.mxu0 %v606
    %624 = vmatpush.bf16.msra.mxu0 %v605
    %625 = vmatpush.bf16.msra.mxu0 %v604
    %626 = vmatpush.bf16.msra.mxu0 %v603
    %627 = vmatmul.bf16.gmra.mxu0 %v536
    %v628 = vpop.f32.mrf.mxu0
    %v629 = vadd.f32 %v569, %v628
    %v630 = vpop.f32.mrf.mxu0
    %v631 = vadd.f32 %v569, %v630
    %632 = vmatmul.bf16.gmra.mxu0 %v537
    %v633 = vpop.f32.mrf.mxu0
    %v634 = vadd.f32 %v569, %v633
    %v635 = vpop.f32.mrf.mxu0
    %v636 = vadd.f32 %v569, %v635
    %637 = vmatmul.bf16.gmra.mxu0 %v538
    %v638 = vpop.f32.mrf.mxu0
    %v639 = vadd.f32 %v569, %v638
    %v640 = vpop.f32.mrf.mxu0
    %v641 = vadd.f32 %v569, %v640
    %642 = vmatmul.bf16.gmra.mxu0 %v539
    %v643 = vpop.f32.mrf.mxu0
    %v644 = vadd.f32 %v569, %v643
    %v645 = vpop.f32.mrf.mxu0
    %v646 = vadd.f32 %v569, %v645
    %647 = vmatmul.bf16.gmra.mxu0 %v540
    %v648 = vpop.f32.mrf.mxu0
    %v649 = vadd.f32 %v569, %v648
    %v650 = vpop.f32.mrf.mxu0
    %v651 = vadd.f32 %v569, %v650
    %652 = vmatmul.bf16.gmra.mxu0 %v541
    %v653 = vpop.f32.mrf.mxu0
    %v654 = vadd.f32 %v569, %v653
    %v655 = vpop.f32.mrf.mxu0
    %v656 = vadd.f32 %v569, %v655
    %657 = vmatmul.bf16.gmra.mxu0 %v542
    %v658 = vpop.f32.mrf.mxu0
    %v659 = vadd.f32 %v569, %v658
    %v660 = vpop.f32.mrf.mxu0
    %v661 = vadd.f32 %v569, %v660
    %662 = vmatmul.bf16.gmra.mxu0 %v543
    %v663 = vpop.f32.mrf.mxu0
    %v664 = vadd.f32 %v569, %v663
    %v665 = vpop.f32.mrf.mxu0
    %v666 = vadd.f32 %v569, %v665
    %667 = vmatmul.bf16.gmra.mxu0 %v544
    %v668 = vpop.f32.mrf.mxu0
    %v669 = vadd.f32 %v569, %v668
    %v670 = vpop.f32.mrf.mxu0
    %v671 = vadd.f32 %v569, %v670
    %672 = vmatmul.bf16.gmra.mxu0 %v545
    %v673 = vpop.f32.mrf.mxu0
    %v674 = vadd.f32 %v569, %v673
    %v675 = vpop.f32.mrf.mxu0
    %v676 = vadd.f32 %v569, %v675
    %677 = vmatmul.bf16.gmra.mxu0 %v546
    %v678 = vpop.f32.mrf.mxu0
    %v679 = vadd.f32 %v569, %v678
    %v680 = vpop.f32.mrf.mxu0
    %v681 = vadd.f32 %v569, %v680
    %682 = vmatmul.bf16.gmra.mxu0 %v547
    %v683 = vpop.f32.mrf.mxu0
    %v684 = vadd.f32 %v569, %v683
    %v685 = vpop.f32.mrf.mxu0
    %v686 = vadd.f32 %v569, %v685
    %687 = vmatmul.bf16.gmra.mxu0 %v548
    %v688 = vpop.f32.mrf.mxu0
    %v689 = vadd.f32 %v569, %v688
    %v690 = vpop.f32.mrf.mxu0
    %v691 = vadd.f32 %v569, %v690
    %692 = vmatmul.bf16.gmra.mxu0 %v549
    %v693 = vpop.f32.mrf.mxu0
    %v694 = vadd.f32 %v569, %v693
    %v695 = vpop.f32.mrf.mxu0
    %v696 = vadd.f32 %v569, %v695
    %697 = vmatmul.bf16.gmra.mxu0 %v550
    %v698 = vpop.f32.mrf.mxu0
    %v699 = vadd.f32 %v569, %v698
    %v700 = vpop.f32.mrf.mxu0
    %v701 = vadd.f32 %v569, %v700
    %702 = vmatmul.bf16.gmra.mxu0 %v551
    %v703 = vpop.f32.mrf.mxu0
    %v704 = vadd.f32 %v569, %v703
    %v705 = vpop.f32.mrf.mxu0
    %v706 = vadd.f32 %v569, %v705
    %707 = vdwg.mxu0
    %v708 = vmax.f32 %v629, 0.0
    %v709 = vmax.f32 %v631, 0.0
    %v710 = vmax.f32 %v634, 0.0
    %v711 = vmax.f32 %v636, 0.0
    %v712 = vmax.f32 %v639, 0.0
    %v713 = vmax.f32 %v641, 0.0
    %v714 = vmax.f32 %v644, 0.0
    %v715 = vmax.f32 %v646, 0.0
    %v716 = vmax.f32 %v649, 0.0
    %v717 = vmax.f32 %v651, 0.0
    %v718 = vmax.f32 %v654, 0.0
    %v719 = vmax.f32 %v656, 0.0
    %v720 = vmax.f32 %v659, 0.0
    %v721 = vmax.f32 %v661, 0.0
    %v722 = vmax.f32 %v664, 0.0
    %v723 = vmax.f32 %v666, 0.0
    %v724 = vmax.f32 %v669, 0.0
    %v725 = vmax.f32 %v671, 0.0
    %v726 = vmax.f32 %v674, 0.0
    %v727 = vmax.f32 %v676, 0.0
    %v728 = vmax.f32 %v679, 0.0
    %v729 = vmax.f32 %v681, 0.0
    %v730 = vmax.f32 %v684, 0.0
    %v731 = vmax.f32 %v686, 0.0
    %v732 = vmax.f32 %v689, 0.0
    %v733 = vmax.f32 %v691, 0.0
    %v734 = vmax.f32 %v694, 0.0
    %v735 = vmax.f32 %v696, 0.0
    %v736 = vmax.f32 %v699, 0.0
    %v737 = vmax.f32 %v701, 0.0
    %v738 = vmax.f32 %v704, 0.0
    %v739 = vmax.f32 %v706, 0.0
    %740 = vst [vmem:[#allocation2] sm:$0xff] %v708
    %741 = vst [vmem:[#allocation2 + $0x8] sm:$0xff] %v709
    %742 = vst [vmem:[#allocation2 + $0x10] sm:$0xff] %v710
    %743 = vst [vmem:[#allocation2 + $0x18] sm:$0xff] %v711
    %744 = vst [vmem:[#allocation2 + $0x20] sm:$0xff] %v712
    %745 = vst [vmem:[#allocation2 + $0x28] sm:$0xff] %v713
    %746 = vst [vmem:[#allocation2 + $0x30] sm:$0xff] %v714
    %747 = vst [vmem:[#allocation2 + $0x38] sm:$0xff] %v715
    %748 = vst [vmem:[#allocation2 + $0x40] sm:$0xff] %v716
    %749 = vst [vmem:[#allocation2 + $0x48] sm:$0xff] %v717
    %750 = vst [vmem:[#allocation2 + $0x50] sm:$0xff] %v718
    %751 = vst [vmem:[#allocation2 + $0x58] sm:$0xff] %v719
    %752 = vst [vmem:[#allocation2 + $0x60] sm:$0xff] %v720
    %753 = vst [vmem:[#allocation2 + $0x68] sm:$0xff] %v721
    %754 = vst [vmem:[#allocation2 + $0x70] sm:$0xff] %v722
    %755 = vst [vmem:[#allocation2 + $0x78] sm:$0xff] %v723
    %756 = vst [vmem:[#allocation2 + $0x80] sm:$0xff] %v724
    %757 = vst [vmem:[#allocation2 + $0x88] sm:$0xff] %v725
    %758 = vst [vmem:[#allocation2 + $0x90] sm:$0xff] %v726
    %759 = vst [vmem:[#allocation2 + $0x98] sm:$0xff] %v727
    %760 = vst [vmem:[#allocation2 + $0xa0] sm:$0xff] %v728
    %761 = vst [vmem:[#allocation2 + $0xa8] sm:$0xff] %v729
    %762 = vst [vmem:[#allocation2 + $0xb0] sm:$0xff] %v730
    %763 = vst [vmem:[#allocation2 + $0xb8] sm:$0xff] %v731
    %764 = vst [vmem:[#allocation2 + $0xc0] sm:$0xff] %v732
    %765 = vst [vmem:[#allocation2 + $0xc8] sm:$0xff] %v733
    %766 = vst [vmem:[#allocation2 + $0xd0] sm:$0xff] %v734
    %767 = vst [vmem:[#allocation2 + $0xd8] sm:$0xff] %v735
    %768 = vst [vmem:[#allocation2 + $0xe0] sm:$0xff] %v736
    %769 = vst [vmem:[#allocation2 + $0xe8] sm:$0xff] %v737
    %770 = vst [vmem:[#allocation2 + $0xf0] sm:$0xff] %v738
    %771 = vst [vmem:[#allocation2 + $0xf8] sm:$0xff] %v739
    // Predicated region
    $region30: #{tpu_custom_call.1} parent=1 // pred_check
      _
    $region31: #{tpu_custom_call.1} parent=1 // pred_check_branch
      %773 = sbr.rel (0) target = $region33
    $region32: #{tpu_custom_call.1} parent=1 // pred_region
      %775 = vsyncadd [#allocation3], 0
      %s776 = sshll.u32 [#allocation2], 4
      %s777 = int_to_ptr.vmem [resolvable:$true] %s776
      %s778 = sshll.u32 %s7, 4
      %s779 = int_to_ptr.hbm [resolvable:$true] %s778
      %784 = dma.vmem_to_hbm [thread:$0]  %s777, 4096, %s779, [#allocation3], 128, 128, 8
    $region33: #{tpu_custom_call.1} parent=1 // pred_fallthru
      _
    // Predicated region
    $region34: #{tpu_custom_call.1} parent=1 // pred_check
      _
    $region35: #{tpu_custom_call.1} parent=1 // pred_check_branch
      %786 = sbr.rel (0) target = $region37
    $region36: #{tpu_custom_call.1} parent=1 // pred_region
      %788 = dma.done [#allocation3], 4096
    $region37: #{tpu_custom_call.1} parent=1 // pred_fallthru
      _
    %789 = vsyncpa [#allocation3], 1

</llo_original>
